<compile_context>
chip_gen: v5e
topology: v5e:2x2
jax: 0.10.0
libtpu: 0.0.40
codegen_flags: <defaults>
</compile_context>

<pallas_src>
import functools

import jax
import jax.numpy as jnp
from jax.experimental import pallas as pl
from jax.experimental.pallas import tpu as pltpu


def _round_up(x, m):
    return ((x + m - 1) // m) * m


# --------------------------------------------------------------------------- #
# Kernel A: attention + fused single-step BiLSTM + feature packing
# --------------------------------------------------------------------------- #
def _feature_kernel(emb_ref, hid_ref, enc_ref, w1_ref, w2_ref, b12_ref, v_ref,
                    wrnn_ref, brnn_ref,
                    feat_ref, hf_ref, hb_ref,
                    *, embed_dim, enc_units2, dec_units):
    E, U2, D = embed_dim, enc_units2, dec_units
    B, S, _ = enc_ref.shape

    emb = emb_ref[...]                                   # (B, E)    f32
    enc = enc_ref[...]                                   # (B, S, U2) bf16

    # ---- Bahdanau attention: score = V(tanh(W1*enc + W2*hidden)), softmax(S) ----
    proj_enc = jnp.dot(enc.reshape(B * S, U2), w1_ref[...],
                       preferred_element_type=jnp.float32)                    # (B*S, D)
    proj_hid = (jnp.dot(hid_ref[...].astype(jnp.bfloat16), w2_ref[...],
                        preferred_element_type=jnp.float32)
                + b12_ref[...])                                               # (B, D)
    proj = proj_enc.reshape(B, S, D) + proj_hid[:, None, :]                   # (B, S, D)
    # V's scalar bias is dropped: a constant shift is softmax-invariant.
    score = jnp.sum(jnp.tanh(proj) * v_ref[...], axis=-1)                     # (B, S)
    score = score - jnp.max(score, axis=-1, keepdims=True)
    e = jnp.exp(score)
    attn = e * pl.reciprocal(jnp.sum(e, axis=-1, keepdims=True), approx=True)
    context = jnp.sum(attn[:, :, None] * enc.astype(jnp.float32), axis=1)     # (B, U2)

    # ---- pack [emb | context | h_f | h_b | 0] into the padded feature slab ----
    feat_ref[...] = jnp.zeros_like(feat_ref)
    feat_ref[:, 0:E] = emb.astype(feat_ref.dtype)
    feat_ref[:, E:E + U2] = context.astype(feat_ref.dtype)

    # ---- single-step BiLSTM, h0=c0=0: ONE fused (B,Kp)@(Kp,8D) gate matmul ----
    # (rows of wrnn beyond E+U2 are zero, feat columns beyond E+U2 are zero)
    gates = (jnp.dot(feat_ref[...], wrnn_ref[...],
                     preferred_element_type=jnp.float32)
             + brnn_ref[...])                                                 # (B, 8D)

    def lstm_half(g):
        i = jax.nn.sigmoid(g[:, 0:D])
        c = jnp.tanh(g[:, 2 * D:3 * D])
        o = jax.nn.sigmoid(g[:, 3 * D:4 * D])
        return o * jnp.tanh(i * c)                     # f-gate irrelevant: c0 == 0

    h_f = lstm_half(gates[:, :4 * D])
    h_b = lstm_half(gates[:, 4 * D:])
    hf_ref[...] = h_f
    hb_ref[...] = h_b
    feat_ref[:, E + U2:E + U2 + D] = h_f.astype(feat_ref.dtype)
    feat_ref[:, E + U2 + D:E + U2 + 2 * D] = h_b.astype(feat_ref.dtype)


# --------------------------------------------------------------------------- #
# Kernel B: vocab-tiled output projection (lane-dense, megacore-parallel)
# --------------------------------------------------------------------------- #
def _projection_kernel(feat_ref, w_ref, b_ref, out_ref):
    out_ref[...] = (jnp.dot(feat_ref[...], w_ref[...],
                            preferred_element_type=jnp.float32)
                    + b_ref[...])


# --------------------------------------------------------------------------- #
# Parameter handling
# --------------------------------------------------------------------------- #
def init_params(key, vocab_size, embedding_dim, enc_units, dec_units):
    """PyTorch-layout ('logical') parameters."""
    ks = jax.random.split(key, 13)

    def nrm(k, shape, scale=0.1):
        return (scale * jax.random.normal(k, shape)).astype(jnp.float32)

    rnn_in = embedding_dim + 2 * enc_units
    fc_in = 2 * enc_units + 2 * dec_units + embedding_dim
    return {
        "embedding": nrm(ks[0], (vocab_size, embedding_dim)),
        # BahdanauAttention: W1: Linear(2*enc_units, dec_units), W2: Linear(dec_units, dec_units), V: Linear(dec_units, 1)
        "w1": nrm(ks[1], (2 * enc_units, dec_units)), "b1": nrm(ks[2], (1, dec_units)),
        "w2": nrm(ks[3], (dec_units, dec_units)),     "b2": nrm(ks[4], (1, dec_units)),
        "v":  nrm(ks[5], (1, dec_units)),             "bv": nrm(ks[6], (1, 1)),
        # LSTM layer 0 (forward / backward); bias is the combined (b_ih + b_hh)
        "wih_f": nrm(ks[7], (4 * dec_units, rnn_in)), "b_f": nrm(ks[8], (1, 4 * dec_units)),
        "wih_b": nrm(ks[9], (4 * dec_units, rnn_in)), "b_b": nrm(ks[10], (1, 4 * dec_units)),
        # fc
        "wfc": nrm(ks[11], (vocab_size, fc_in)), "bfc": nrm(ks[12], (1, vocab_size)),
    }


def prepare_params(p, *, embedding_dim, enc_units, dec_units, vocab_size, tile_n=512):
    """One-time conversion to kernel layout: transpose, fuse, pad, cast to bf16."""
    E, D, U2, V = embedding_dim, dec_units, 2 * enc_units, vocab_size
    rnn_in = E + U2
    fc_in = E + U2 + 2 * D
    Kp = _round_up(fc_in, 128)            # fused-feature / matmul-K padding
    Vp = _round_up(V, tile_n)             # vocab padded to the tile width
    bf16 = jnp.bfloat16

    # fused BiLSTM input weights: (Kp, 8D); rows >= rnn_in are zero
    w_rnn = jnp.zeros((Kp, 8 * D), jnp.float32)
    w_rnn = w_rnn.at[:rnn_in, :4 * D].set(p["wih_f"].T)
    w_rnn = w_rnn.at[:rnn_in, 4 * D:].set(p["wih_b"].T)
    b_rnn = jnp.concatenate([p["b_f"], p["b_b"]], axis=1).astype(jnp.float32)

    # fused fc weight: (Kp, Vp), feature order [emb | ctx | h_f | h_b | pad]
    w_fc = jnp.zeros((Kp, Vp), jnp.float32).at[:fc_in, :V].set(p["wfc"].T)
    b_fc = jnp.zeros((1, Vp), jnp.float32).at[:, :V].set(p["bfc"])

    return {
        "embedding": p["embedding"].astype(jnp.float32),
        "w1": p["w1"].astype(bf16),                      # (U2, D)
        "w2": p["w2"].astype(bf16),                      # (D, D)
        "b12": (p["b1"] + p["b2"]).astype(jnp.float32),  # (1, D)
        "v": p["v"].astype(jnp.float32),                 # (1, D)
        "w_rnn": w_rnn.astype(bf16), "b_rnn": b_rnn,     # (Kp, 8D), (1, 8D)
        "w_fc": w_fc.astype(bf16), "b_fc": b_fc,         # (Kp, Vp), (1, Vp)
    }


# --------------------------------------------------------------------------- #
# Forward
# --------------------------------------------------------------------------- #
def decoder_forward(prep, inputs, hidden, enc_output, *,
                    embedding_dim, enc_units, dec_units, vocab_size, tile_n=512):
    E, D, U2, V = embedding_dim, dec_units, 2 * enc_units, vocab_size
    Kp, Vp = prep["w_fc"].shape
    assert tile_n % 128 == 0 and Vp % tile_n == 0

    # glue: embedding gather; dropout in eval mode == identity.
    # TODO(synk): fuse the token gather into the kernel via scalar prefetch once
    # the full decode loop is batched into a single gridded kernel.
    emb = prep["embedding"][inputs]                      # (1, B, E)
    _, B, _ = emb.shape
    emb2 = emb.reshape(B, E)
    enc_bf = enc_output.astype(jnp.bfloat16)             # (B, S, U2) bf16

    vmem = pl.BlockSpec(memory_space=pltpu.MemorySpace.VMEM)

    # ---- kernel A: attention + fused BiLSTM + feature packing ----
    feat, h_f, h_b = pl.pallas_call(
        functools.partial(_feature_kernel,
                          embed_dim=E, enc_units2=U2, dec_units=D),
        out_shape=(jax.ShapeDtypeStruct((B, Kp), jnp.bfloat16),
                   jax.ShapeDtypeStruct((B, D), jnp.float32),
                   jax.ShapeDtypeStruct((B, D), jnp.float32)),
        in_specs=[vmem] * 9,
        out_specs=(vmem, vmem, vmem),
        compiler_params=pltpu.CompilerParams(vmem_limit_bytes=64 * 1024 * 1024),
    )(emb2, hidden, enc_bf,
      prep["w1"], prep["w2"], prep["b12"], prep["v"],
      prep["w_rnn"], prep["b_rnn"])

    # ---- kernel B: vocab-tiled output projection ----
    logits_p = pl.pallas_call(
        _projection_kernel,
        grid=(Vp // tile_n,),
        in_specs=[pl.BlockSpec((B, Kp), lambda j: (0, 0)),       # resident LHS
                  pl.BlockSpec((Kp, tile_n), lambda j: (0, j)),  # weight tile
                  pl.BlockSpec((1, tile_n), lambda j: (0, j))],  # bias tile
        out_specs=pl.BlockSpec((B, tile_n), lambda j: (0, j)),
        out_shape=jax.ShapeDtypeStruct((B, Vp), jnp.float32),
        compiler_params=pltpu.CompilerParams(
            dimension_semantics=("parallel",),                   # v7x megacore split
            vmem_limit_bytes=64 * 1024 * 1024),
    )(feat, prep["w_fc"], prep["b_fc"])

    output = logits_p[:, :V].reshape(1, B, V)            # (1, B, vocab)
    dec_state = jnp.stack([h_f, h_b], axis=0)            # h_n: (2, B, Du)
    return output, dec_state


# --------------------------------------------------------------------------- #
# Plain-JAX f32 reference (PyTorch-layout params) for the correctness check
# --------------------------------------------------------------------------- #
def _reference(params, inputs, hidden, enc_output, dec_units):
    D = dec_units
    emb = params["embedding"][inputs]                    # (1, B, E)
    proj = jnp.tanh(enc_output @ params["w1"] + params["b1"][0]
                    + (hidden @ params["w2"] + params["b2"][0])[:, None, :])
    score = jnp.sum(proj * params["v"][0], axis=-1) + params["bv"][0, 0]
    attn = jax.nn.softmax(score, axis=-1)
    context = jnp.sum(attn[:, :, None] * enc_output, axis=1)
    rnn_in = jnp.concatenate([emb[0], context], axis=-1)

    def cell(wih, b):
        g = rnn_in @ wih.T + b[0]
        i = jax.nn.sigmoid(g[:, :D])
        gg = jnp.tanh(g[:, 2 * D:3 * D])
        o = jax.nn.sigmoid(g[:, 3 * D:])
        return o * jnp.tanh(i * gg)

    h_f, h_b = cell(params["wih_f"], params["b_f"]), cell(params["wih_b"], params["b_b"])
    rnn_out = jnp.concatenate([h_f, h_b], axis=-1)
    fc_in = jnp.concatenate([emb[0], context, rnn_out], axis=-1)
    out = fc_in @ params["wfc"].T + params["bfc"][0]
    return out[None], jnp.stack([h_f, h_b], axis=0)


if __name__ == "__main__":
    vocab_size, embedding_dim, enc_units, dec_units = 512, 16, 16, 16
    B, S, tile_n = 8, 16, 128

    key = jax.random.PRNGKey(0)
    kp, ki, kh, ke = jax.random.split(key, 4)
    params = init_params(kp, vocab_size, embedding_dim, enc_units, dec_units)
    prep = prepare_params(params, embedding_dim=embedding_dim, enc_units=enc_units,
                          dec_units=dec_units, vocab_size=vocab_size, tile_n=tile_n)

    inputs = jax.random.randint(ki, (1, B), 0, vocab_size)                    # (T=1, B) token ids
    hidden = jax.random.normal(kh, (B, dec_units), dtype=jnp.float32)         # decoder hidden query
    enc_output = jax.random.normal(ke, (B, S, 2 * enc_units), dtype=jnp.float32)

    output, dec_state = decoder_forward(
        prep, inputs, hidden, enc_output,
        embedding_dim=embedding_dim, enc_units=enc_units,
        dec_units=dec_units, vocab_size=vocab_size, tile_n=tile_n)
    jax.block_until_ready((output, dec_state))

    ref_out, ref_state = _reference(params, inputs, hidden, enc_output, dec_units)
    assert output.shape == (1, B, vocab_size) and dec_state.shape == (2, B, dec_units)
    d_out = float(jnp.max(jnp.abs(output - ref_out)))
    d_state = float(jnp.max(jnp.abs(dec_state - ref_state)))
    # bf16 weights/activations vs f32 reference -> small (~1e-2) numerical delta.
    assert d_out < 5e-2, f"logits mismatch, max |diff| = {d_out}"
    assert d_state < 5e-2, f"dec_state mismatch, max |diff| = {d_state}"

    print("KERNEL_OK")
</pallas_src>

<mosaic_0001>
module attributes {stable_mosaic.version = 11 : i64} {
  func.func @_feature_kernel(%arg0: memref<8x16xf32, #tpu.memory_space<vmem>>, %arg1: memref<8x16xf32, #tpu.memory_space<vmem>>, %arg2: memref<8x16x32xbf16, #tpu.memory_space<vmem>>, %arg3: memref<32x16xbf16, #tpu.memory_space<vmem>>, %arg4: memref<16x16xbf16, #tpu.memory_space<vmem>>, %arg5: memref<1x16xf32, #tpu.memory_space<vmem>>, %arg6: memref<1x16xf32, #tpu.memory_space<vmem>>, %arg7: memref<128x128xbf16, #tpu.memory_space<vmem>>, %arg8: memref<1x128xf32, #tpu.memory_space<vmem>>, %arg9: memref<8x128xbf16, #tpu.memory_space<vmem>>, %arg10: memref<8x16xf32, #tpu.memory_space<vmem>>, %arg11: memref<8x16xf32, #tpu.memory_space<vmem>>) attributes {dimension_semantics = [], scalar_prefetch = 0 : i64, scratch_operands = 0 : i64, tpu.core_type = #tpu.core_type<tc>} {
    %c0 = arith.constant 0 : index
    %c0_0 = arith.constant 0 : index
    %0 = vector.load %arg0[%c0, %c0_0] : memref<8x16xf32, #tpu.memory_space<vmem>>, vector<8x16xf32>
    %c0_1 = arith.constant 0 : index
    %c0_2 = arith.constant 0 : index
    %c0_3 = arith.constant 0 : index
    %1 = vector.load %arg2[%c0_1, %c0_2, %c0_3] : memref<8x16x32xbf16, #tpu.memory_space<vmem>>, vector<8x16x32xbf16>
    %2 = vector.shape_cast %1 : vector<8x16x32xbf16> to vector<128x32xbf16>
    %c0_4 = arith.constant 0 : index
    %c0_5 = arith.constant 0 : index
    %3 = vector.load %arg3[%c0_4, %c0_5] : memref<32x16xbf16, #tpu.memory_space<vmem>>, vector<32x16xbf16>
    %cst = arith.constant dense<0.000000e+00> : vector<128x16xf32>
    %4 = tpu.matmul %2, %3, %cst {dimension_numbers = #tpu.dot_dimension_numbers<[1], [0], [0], [1], [0, 0, 1, 1], [], []>} : vector<128x32xbf16>, vector<32x16xbf16>, vector<128x16xf32> -> vector<128x16xf32>
    %c0_6 = arith.constant 0 : index
    %c0_7 = arith.constant 0 : index
    %5 = vector.load %arg1[%c0_6, %c0_7] : memref<8x16xf32, #tpu.memory_space<vmem>>, vector<8x16xf32>
    %6 = arith.truncf %5 : vector<8x16xf32> to vector<8x16xbf16>
    %c0_8 = arith.constant 0 : index
    %c0_9 = arith.constant 0 : index
    %7 = vector.load %arg4[%c0_8, %c0_9] : memref<16x16xbf16, #tpu.memory_space<vmem>>, vector<16x16xbf16>
    %cst_10 = arith.constant dense<0.000000e+00> : vector<8x16xf32>
    %8 = tpu.matmul %6, %7, %cst_10 {dimension_numbers = #tpu.dot_dimension_numbers<[1], [0], [0], [1], [0, 0, 1, 1], [], []>} : vector<8x16xbf16>, vector<16x16xbf16>, vector<8x16xf32> -> vector<8x16xf32>
    %c0_11 = arith.constant 0 : index
    %c0_12 = arith.constant 0 : index
    %9 = vector.load %arg5[%c0_11, %c0_12] : memref<1x16xf32, #tpu.memory_space<vmem>>, vector<1x16xf32>
    %10 = vector.broadcast %9 : vector<1x16xf32> to vector<8x16xf32>
    %11 = arith.addf %8, %10 : vector<8x16xf32>
    %12 = vector.shape_cast %4 : vector<128x16xf32> to vector<8x16x16xf32>
    %13 = vector.shape_cast %11 : vector<8x16xf32> to vector<8x1x16xf32>
    %14 = vector.broadcast %13 : vector<8x1x16xf32> to vector<8x16x16xf32>
    %15 = arith.addf %12, %14 : vector<8x16x16xf32>
    %16 = math.tanh %15 : vector<8x16x16xf32>
    %c0_13 = arith.constant 0 : index
    %c0_14 = arith.constant 0 : index
    %17 = vector.load %arg6[%c0_13, %c0_14] : memref<1x16xf32, #tpu.memory_space<vmem>>, vector<1x16xf32>
    %18 = vector.shape_cast %17 : vector<1x16xf32> to vector<1x1x16xf32>
    %19 = vector.broadcast %18 : vector<1x1x16xf32> to vector<8x16x16xf32>
    %20 = arith.mulf %16, %19 : vector<8x16x16xf32>
    %cst_15 = arith.constant dense<0.000000e+00> : vector<8x16xf32>
    %21 = vector.multi_reduction <add>, %20, %cst_15 [2] : vector<8x16x16xf32> to vector<8x16xf32>
    %cst_16 = arith.constant dense<0xFF800000> : vector<8xf32>
    %22 = vector.multi_reduction <maximumf>, %21, %cst_16 [1] : vector<8x16xf32> to vector<8xf32>
    %23 = vector.shape_cast %22 : vector<8xf32> to vector<8x1xf32>
    %24 = vector.broadcast %23 : vector<8x1xf32> to vector<8x16xf32>
    %25 = arith.subf %21, %24 : vector<8x16xf32>
    %26 = math.exp %25 : vector<8x16xf32>
    %cst_17 = arith.constant dense<0.000000e+00> : vector<8xf32>
    %27 = vector.multi_reduction <add>, %26, %cst_17 [1] : vector<8x16xf32> to vector<8xf32>
    %28 = vector.shape_cast %27 : vector<8xf32> to vector<8x1xf32>
    %29 = tpu.reciprocal %28 {approx = true} : vector<8x1xf32> -> vector<8x1xf32>
    %30 = vector.broadcast %29 : vector<8x1xf32> to vector<8x16xf32>
    %31 = arith.mulf %26, %30 : vector<8x16xf32>
    %32 = vector.shape_cast %31 : vector<8x16xf32> to vector<8x16x1xf32>
    %33 = arith.extf %1 : vector<8x16x32xbf16> to vector<8x16x32xf32>
    %34 = vector.broadcast %32 : vector<8x16x1xf32> to vector<8x16x32xf32>
    %35 = arith.mulf %34, %33 : vector<8x16x32xf32>
    %cst_18 = arith.constant dense<0.000000e+00> : vector<8x32xf32>
    %36 = vector.multi_reduction <add>, %35, %cst_18 [1] : vector<8x16x32xf32> to vector<8x32xf32>
    %cst_19 = arith.constant 0.000000e+00 : bf16
    %37 = vector.broadcast %cst_19 : bf16 to vector<8x128xbf16>
    %c0_20 = arith.constant 0 : index
    %c0_21 = arith.constant 0 : index
    %38 = vector.load %arg9[%c0_20, %c0_21] : memref<8x128xbf16, #tpu.memory_space<vmem>>, vector<8x128xbf16>
    tpu.vector_store %arg9[%c0_20, %c0_21], %37 {strides = array<i32>} : memref<8x128xbf16, #tpu.memory_space<vmem>>, vector<8x128xbf16>,
    %39 = arith.truncf %0 : vector<8x16xf32> to vector<8x16xbf16>
    %c0_22 = arith.constant 0 : index
    %c0_23 = arith.constant 0 : index
    %40 = vector.load %arg9[%c0_22, %c0_23] : memref<8x128xbf16, #tpu.memory_space<vmem>>, vector<8x16xbf16>
    tpu.vector_store %arg9[%c0_22, %c0_23], %39 {strides = array<i32>} : memref<8x128xbf16, #tpu.memory_space<vmem>>, vector<8x16xbf16>,
    %41 = arith.truncf %36 : vector<8x32xf32> to vector<8x32xbf16>
    %c0_24 = arith.constant 0 : index
    %c16 = arith.constant 16 : index
    %42 = vector.load %arg9[%c0_24, %c16] : memref<8x128xbf16, #tpu.memory_space<vmem>>, vector<8x32xbf16>
    tpu.vector_store %arg9[%c0_24, %c16], %41 {strides = array<i32>} : memref<8x128xbf16, #tpu.memory_space<vmem>>, vector<8x32xbf16>,
    %c0_25 = arith.constant 0 : index
    %c0_26 = arith.constant 0 : index
    %43 = vector.load %arg9[%c0_25, %c0_26] : memref<8x128xbf16, #tpu.memory_space<vmem>>, vector<8x128xbf16>
    %c0_27 = arith.constant 0 : index
    %c0_28 = arith.constant 0 : index
    %44 = vector.load %arg7[%c0_27, %c0_28] : memref<128x128xbf16, #tpu.memory_space<vmem>>, vector<128x128xbf16>
    %cst_29 = arith.constant dense<0.000000e+00> : vector<8x128xf32>
    %45 = tpu.matmul %43, %44, %cst_29 {dimension_numbers = #tpu.dot_dimension_numbers<[1], [0], [0], [1], [0, 0, 1, 1], [], []>} : vector<8x128xbf16>, vector<128x128xbf16>, vector<8x128xf32> -> vector<8x128xf32>
    %c0_30 = arith.constant 0 : index
    %c0_31 = arith.constant 0 : index
    %46 = vector.load %arg8[%c0_30, %c0_31] : memref<1x128xf32, #tpu.memory_space<vmem>>, vector<1x128xf32>
    %47 = vector.broadcast %46 : vector<1x128xf32> to vector<8x128xf32>
    %48 = arith.addf %45, %47 : vector<8x128xf32>
    %49 = vector.extract_strided_slice %48 {offsets = [0, 0], sizes = [8, 64], strides = [1, 1]} : vector<8x128xf32> to vector<8x64xf32>
    %50 = vector.extract_strided_slice %49 {offsets = [0, 0], sizes = [8, 16], strides = [1, 1]} : vector<8x64xf32> to vector<8x16xf32>
    %51 = arith.negf %50 : vector<8x16xf32>
    %52 = math.exp %51 : vector<8x16xf32>
    %cst_32 = arith.constant 1.000000e+00 : f32
    %53 = vector.broadcast %cst_32 : f32 to vector<8x16xf32>
    %54 = arith.addf %53, %52 : vector<8x16xf32>
    %55 = arith.divf %53, %54 : vector<8x16xf32>
    %56 = vector.extract_strided_slice %49 {offsets = [0, 32], sizes = [8, 16], strides = [1, 1]} : vector<8x64xf32> to vector<8x16xf32>
    %57 = math.tanh %56 : vector<8x16xf32>
    %58 = vector.extract_strided_slice %49 {offsets = [0, 48], sizes = [8, 16], strides = [1, 1]} : vector<8x64xf32> to vector<8x16xf32>
    %59 = arith.negf %58 : vector<8x16xf32>
    %60 = math.exp %59 : vector<8x16xf32>
    %cst_33 = arith.constant 1.000000e+00 : f32
    %61 = vector.broadcast %cst_33 : f32 to vector<8x16xf32>
    %62 = arith.addf %61, %60 : vector<8x16xf32>
    %63 = arith.divf %61, %62 : vector<8x16xf32>
    %64 = arith.mulf %55, %57 : vector<8x16xf32>
    %65 = math.tanh %64 : vector<8x16xf32>
    %66 = arith.mulf %63, %65 : vector<8x16xf32>
    %67 = vector.extract_strided_slice %48 {offsets = [0, 64], sizes = [8, 64], strides = [1, 1]} : vector<8x128xf32> to vector<8x64xf32>
    %68 = vector.extract_strided_slice %67 {offsets = [0, 0], sizes = [8, 16], strides = [1, 1]} : vector<8x64xf32> to vector<8x16xf32>
    %69 = arith.negf %68 : vector<8x16xf32>
    %70 = math.exp %69 : vector<8x16xf32>
    %cst_34 = arith.constant 1.000000e+00 : f32
    %71 = vector.broadcast %cst_34 : f32 to vector<8x16xf32>
    %72 = arith.addf %71, %70 : vector<8x16xf32>
    %73 = arith.divf %71, %72 : vector<8x16xf32>
    %74 = vector.extract_strided_slice %67 {offsets = [0, 32], sizes = [8, 16], strides = [1, 1]} : vector<8x64xf32> to vector<8x16xf32>
    %75 = math.tanh %74 : vector<8x16xf32>
    %76 = vector.extract_strided_slice %67 {offsets = [0, 48], sizes = [8, 16], strides = [1, 1]} : vector<8x64xf32> to vector<8x16xf32>
    %77 = arith.negf %76 : vector<8x16xf32>
    %78 = math.exp %77 : vector<8x16xf32>
    %cst_35 = arith.constant 1.000000e+00 : f32
    %79 = vector.broadcast %cst_35 : f32 to vector<8x16xf32>
    %80 = arith.addf %79, %78 : vector<8x16xf32>
    %81 = arith.divf %79, %80 : vector<8x16xf32>
    %82 = arith.mulf %73, %75 : vector<8x16xf32>
    %83 = math.tanh %82 : vector<8x16xf32>
    %84 = arith.mulf %81, %83 : vector<8x16xf32>
    %c0_36 = arith.constant 0 : index
    %c0_37 = arith.constant 0 : index
    %85 = vector.load %arg10[%c0_36, %c0_37] : memref<8x16xf32, #tpu.memory_space<vmem>>, vector<8x16xf32>
    tpu.vector_store %arg10[%c0_36, %c0_37], %66 {strides = array<i32>} : memref<8x16xf32, #tpu.memory_space<vmem>>, vector<8x16xf32>,
    %c0_38 = arith.constant 0 : index
    %c0_39 = arith.constant 0 : index
    %86 = vector.load %arg11[%c0_38, %c0_39] : memref<8x16xf32, #tpu.memory_space<vmem>>, vector<8x16xf32>
    tpu.vector_store %arg11[%c0_38, %c0_39], %84 {strides = array<i32>} : memref<8x16xf32, #tpu.memory_space<vmem>>, vector<8x16xf32>,
    %87 = arith.truncf %66 : vector<8x16xf32> to vector<8x16xbf16>
    %c0_40 = arith.constant 0 : index
    %c48 = arith.constant 48 : index
    %88 = vector.load %arg9[%c0_40, %c48] : memref<8x128xbf16, #tpu.memory_space<vmem>>, vector<8x16xbf16>
    tpu.vector_store %arg9[%c0_40, %c48], %87 {strides = array<i32>} : memref<8x128xbf16, #tpu.memory_space<vmem>>, vector<8x16xbf16>,
    %89 = arith.truncf %84 : vector<8x16xf32> to vector<8x16xbf16>
    %c0_41 = arith.constant 0 : index
    %c64 = arith.constant 64 : index
    %90 = vector.load %arg9[%c0_41, %c64] : memref<8x128xbf16, #tpu.memory_space<vmem>>, vector<8x16xbf16>
    tpu.vector_store %arg9[%c0_41, %c64], %89 {strides = array<i32>} : memref<8x128xbf16, #tpu.memory_space<vmem>>, vector<8x16xbf16>,
    return
  }
}

</mosaic_0001>

<llo_original>
// kernel: tpu_custom_call.1
$region0: #{tpu_custom_call.1}
  #allocation0 [shape = 'u32[]', space=smem, size = 0x4, offset = 0x4, fixed_abs, tag = 'smem constant byte address 0x4 - core index']
  #allocation1 [shape = 'u32[72,128]{1,0:T(1,128)}', space=vmem, size = 0x9000, scoped, tag = 'internal scratch']
  %s0 = inlined_call_operand.vmem [shape: f32[8,16], index: 0, kind: input, shape index: {}]
  %s1 = inlined_call_operand.vmem [shape: f32[8,16], index: 1, kind: input, shape index: {}]
  %s2 = inlined_call_operand.hbm [shape: bf16[8,16,32], index: 2, kind: input, shape index: {}]
  %s3 = inlined_call_operand.vmem [shape: bf16[32,16], index: 3, kind: input, shape index: {}]
  %s4 = inlined_call_operand.vmem [shape: bf16[16,16], index: 4, kind: input, shape index: {}]
  %s5 = inlined_call_operand.vmem [shape: f32[1,16], index: 5, kind: input, shape index: {}]
  %s6 = inlined_call_operand.vmem [shape: f32[1,16], index: 6, kind: input, shape index: {}]
  %s7 = inlined_call_operand.hbm [shape: bf16[128,128], index: 7, kind: input, shape index: {}]
  %s8 = inlined_call_operand.vmem [shape: f32[1,128], index: 8, kind: input, shape index: {}]
  %s9 = inlined_call_operand.hbm [shape: bf16[8,128], index: 9, kind: output, shape index: {0}]
  %s10 = inlined_call_operand.hbm [shape: f32[8,16], index: 10, kind: output, shape index: {1}]
  %s11 = inlined_call_operand.hbm [shape: f32[8,16], index: 11, kind: output, shape index: {2}]
  %12 = xla_tuple %s9, %s10, %s11
  %s13 = sld [smem:[#allocation0]]
  $region70: #{tpu_custom_call.1} parent=0
    _
  %s15 = ssub.s32 1, %s13
  %s16 = scalar_select 0, %s15, %s13
  $region1: #{tpu_custom_call.1} parent=0
    #allocation2 [shape = 'u8[32768]{0}', space=vmem, size = 0x8000, scoped, tag = 'input window, operand 2, single buffered']
    #allocation3 [shape = 's32[1]{0}', space=sflag, size = 0x4, scoped, tag = 'scoped memory for tpu_custom_call.1']
    #allocation4 [shape = 's32[1]{0}', space=sflag, size = 0x4, scoped, tag = 'scoped memory for tpu_custom_call.1']
    #allocation5 [shape = 'u8[32768]{0}', space=vmem, size = 0x8000, scoped, tag = 'input window, operand 7, single buffered']
    #allocation6 [shape = 's32[1]{0}', space=sflag, size = 0x4, scoped, tag = 'scoped memory for tpu_custom_call.1']
    #allocation7 [shape = 'u8[2048]{0}', space=vmem, size = 0x800, scoped, tag = 'output window, operand 0, single buffered']
    #allocation8 [shape = 'u8[4096]{0}', space=vmem, size = 0x1000, scoped, tag = 'output window, operand 1, single buffered']
    #allocation9 [shape = 's32[1]{0}', space=sflag, size = 0x4, scoped, tag = 'scoped memory for tpu_custom_call.1']
    #allocation10 [shape = 'u8[4096]{0}', space=vmem, size = 0x1000, scoped, tag = 'output window, operand 2, single buffered']
    %17 = vsyncpa [#allocation3], 0
    %18 = vsyncpa [#allocation6], 0
    %19 = vsyncpa [#allocation4], 0
    %20 = vsyncpa [#allocation9], 0
    // Predicated region
    $region2: #{tpu_custom_call.1} parent=1 // pred_check
      _
    $region3: #{tpu_custom_call.1} parent=1 // pred_check_branch
      %22 = sbr.rel (0) target = $region5
    $region4: #{tpu_custom_call.1} parent=1 // pred_region
      _
    $region5: #{tpu_custom_call.1} parent=1 // pred_fallthru
      _
    // Predicated region
    $region6: #{tpu_custom_call.1} parent=1 // pred_check
      _
    $region7: #{tpu_custom_call.1} parent=1 // pred_check_branch
      %24 = sbr.rel (0) target = $region9
    $region8: #{tpu_custom_call.1} parent=1 // pred_region
      _
    $region9: #{tpu_custom_call.1} parent=1 // pred_fallthru
      _
    // Predicated region
    $region10: #{tpu_custom_call.1} parent=1 // pred_check
      _
    $region11: #{tpu_custom_call.1} parent=1 // pred_check_branch
      %26 = sbr.rel (0) target = $region13
    $region12: #{tpu_custom_call.1} parent=1 // pred_region
      %28 = vsyncadd [#allocation3], 0
      %s29 = sshll.u32 %s2, 4
      %s30 = int_to_ptr.hbm [resolvable:$true] %s29
      %s31 = sshll.u32 [#allocation2], 4
      %s32 = int_to_ptr.vmem [resolvable:$true] %s31
      %37 = dma.hbm_to_vmem [thread:$0]  %s30, 1024, %s32, [#allocation3], 64, 64, 4
    $region13: #{tpu_custom_call.1} parent=1 // pred_fallthru
      _
    // Predicated region
    $region14: #{tpu_custom_call.1} parent=1 // pred_check
      _
    $region15: #{tpu_custom_call.1} parent=1 // pred_check_branch
      %39 = sbr.rel (0) target = $region17
    $region16: #{tpu_custom_call.1} parent=1 // pred_region
      _
    $region17: #{tpu_custom_call.1} parent=1 // pred_fallthru
      _
    // Predicated region
    $region18: #{tpu_custom_call.1} parent=1 // pred_check
      _
    $region19: #{tpu_custom_call.1} parent=1 // pred_check_branch
      %41 = sbr.rel (0) target = $region21
    $region20: #{tpu_custom_call.1} parent=1 // pred_region
      _
    $region21: #{tpu_custom_call.1} parent=1 // pred_fallthru
      _
    // Predicated region
    $region22: #{tpu_custom_call.1} parent=1 // pred_check
      _
    $region23: #{tpu_custom_call.1} parent=1 // pred_check_branch
      %43 = sbr.rel (0) target = $region25
    $region24: #{tpu_custom_call.1} parent=1 // pred_region
      _
    $region25: #{tpu_custom_call.1} parent=1 // pred_fallthru
      _
    // Predicated region
    $region26: #{tpu_custom_call.1} parent=1 // pred_check
      _
    $region27: #{tpu_custom_call.1} parent=1 // pred_check_branch
      %45 = sbr.rel (0) target = $region29
    $region28: #{tpu_custom_call.1} parent=1 // pred_region
      _
    $region29: #{tpu_custom_call.1} parent=1 // pred_fallthru
      _
    // Predicated region
    $region30: #{tpu_custom_call.1} parent=1 // pred_check
      _
    $region31: #{tpu_custom_call.1} parent=1 // pred_check_branch
      %47 = sbr.rel (0) target = $region33
    $region32: #{tpu_custom_call.1} parent=1 // pred_region
      %49 = vsyncadd [#allocation6], 0
      %s50 = sshll.u32 %s7, 4
      %s51 = int_to_ptr.hbm [resolvable:$true] %s50
      %s52 = sshll.u32 [#allocation5], 4
      %s53 = int_to_ptr.vmem [resolvable:$true] %s52
      %58 = dma.hbm_to_vmem [thread:$0]  %s51, 1024, %s53, [#allocation6], 64, 64, 4
    $region33: #{tpu_custom_call.1} parent=1 // pred_fallthru
      _
    // Predicated region
    $region34: #{tpu_custom_call.1} parent=1 // pred_check
      _
    $region35: #{tpu_custom_call.1} parent=1 // pred_check_branch
      %60 = sbr.rel (0) target = $region37
    $region36: #{tpu_custom_call.1} parent=1 // pred_region
      _
    $region37: #{tpu_custom_call.1} parent=1 // pred_fallthru
      _
    // Predicated region
    $region38: #{tpu_custom_call.1} parent=1 // pred_check
      _
    $region39: #{tpu_custom_call.1} parent=1 // pred_check_branch
      %62 = sbr.rel (0) target = $region41
    $region40: #{tpu_custom_call.1} parent=1 // pred_region
      %64 = dma.done [#allocation3], 1024
    $region41: #{tpu_custom_call.1} parent=1 // pred_fallthru
      _
    // Predicated region
    $region42: #{tpu_custom_call.1} parent=1 // pred_check
      _
    $region43: #{tpu_custom_call.1} parent=1 // pred_check_branch
      %66 = sbr.rel (0) target = $region45
    $region44: #{tpu_custom_call.1} parent=1 // pred_region
      %68 = dma.done [#allocation6], 1024
    $region45: #{tpu_custom_call.1} parent=1 // pred_fallthru
      _
    %v70 = vld [vmem:[%s0] sm:$0xff]
    %v71 = vld [vmem:[#allocation2] sm:$0xf]
    %v72 = vld [vmem:[#allocation2 + $0x4] sm:$0xf]
    %v73 = vld [vmem:[#allocation2 + $0x8] sm:$0xf]
    %v74 = vld [vmem:[#allocation2 + $0xc] sm:$0xf]
    %v75 = vld [vmem:[#allocation2 + $0x10] sm:$0xf]
    %v76 = vld [vmem:[#allocation2 + $0x14] sm:$0xf]
    %v77 = vld [vmem:[#allocation2 + $0x18] sm:$0xf]
    %v78 = vld [vmem:[#allocation2 + $0x1c] sm:$0xf]
    %v79 = vld [vmem:[#allocation2 + $0x20] sm:$0xf]
    %v80 = vld [vmem:[#allocation2 + $0x24] sm:$0xf]
    %v81 = vld [vmem:[#allocation2 + $0x28] sm:$0xf]
    %v82 = vld [vmem:[#allocation2 + $0x2c] sm:$0xf]
    %v83 = vld [vmem:[#allocation2 + $0x30] sm:$0xf]
    %v84 = vld [vmem:[#allocation2 + $0x34] sm:$0xf]
    %v85 = vld [vmem:[#allocation2 + $0x38] sm:$0xf]
    %v86 = vld [vmem:[#allocation2 + $0x3c] sm:$0xf]
    %v87 = vld [vmem:[%s3] sm:$0xf]
    %v88 = vld [vmem:[%s3 + $0x4] sm:$0xf]
    %v89 = vld [vmem:[%s3 + $0x8] sm:$0xf]
    %v90 = vld [vmem:[%s3 + $0xc] sm:$0xf]
    %v107 = vunpack.c.l.b16 %v71
    %v108 = vunpack.c.l.b16 %v72
    %v109 = vunpack.c.l.b16 %v73
    %v110 = vunpack.c.l.b16 %v74
    %v111 = vunpack.c.l.b16 %v75
    %v112 = vunpack.c.l.b16 %v76
    %v113 = vunpack.c.l.b16 %v77
    %v114 = vunpack.c.l.b16 %v78
    %v115 = vunpack.c.l.b16 %v79
    %v116 = vunpack.c.l.b16 %v80
    %v117 = vunpack.c.l.b16 %v81
    %v118 = vunpack.c.l.b16 %v82
    %v119 = vunpack.c.l.b16 %v83
    %v120 = vunpack.c.l.b16 %v84
    %v121 = vunpack.c.l.b16 %v85
    %v122 = vunpack.c.l.b16 %v86
    %v123 = vpack.c.b16 %v108, %v107
    %v124 = vpack.c.b16 %v110, %v109
    %v125 = vpack.c.b16 %v112, %v111
    %v126 = vpack.c.b16 %v114, %v113
    %v127 = vpack.c.b16 %v116, %v115
    %v128 = vpack.c.b16 %v118, %v117
    %v129 = vpack.c.b16 %v120, %v119
    %v130 = vpack.c.b16 %v122, %v121
    %v135 = vunpack.c.l.b16 %v87
    %v136 = vunpack.c.l.b16 %v88
    %v137 = vunpack.c.l.b16 %v89
    %v138 = vunpack.c.l.b16 %v90
    %v139 = vpack.c.b16 %v136, %v135
    %v140 = vpack.c.b16 %v138, %v137
    %vm143 = vcmask 261120
    %v145 = vsel %vm143, %v123, 0
    %v148 = vsel %vm143, %v124, 0
    %v151 = vsel %vm143, %v125, 0
    %v154 = vsel %vm143, %v126, 0
    %v157 = vsel %vm143, %v127, 0
    %v160 = vsel %vm143, %v128, 0
    %v163 = vsel %vm143, %v129, 0
    %v166 = vsel %vm143, %v130, 0
    %168 = vmatpush.bf16.msra.mxu0 0
    %169 = vmatpush.bf16.msra.mxu0 0
    %170 = vmatpush.bf16.msra.mxu0 0
    %171 = vmatpush.bf16.msra.mxu0 0
    %172 = vmatpush.bf16.msra.mxu0 0
    %173 = vmatpush.bf16.msra.mxu0 0
    %174 = vmatpush.bf16.msra.mxu0 %v140
    %175 = vmatpush.bf16.msra.mxu0 %v139
    %176 = vmatmul.bf16.gmra.mxu0 %v145
    %v177 = vpop.f32.mrf.mxu0
    %v178 = vadd.f32 0.0, %v177
    %v179 = vpop.f32.mrf.mxu0
    %v180 = vadd.f32 0.0, %v179
    %181 = vmatmul.bf16.gmra.mxu0 %v148
    %v182 = vpop.f32.mrf.mxu0
    %v183 = vadd.f32 0.0, %v182
    %v184 = vpop.f32.mrf.mxu0
    %v185 = vadd.f32 0.0, %v184
    %186 = vmatmul.bf16.gmra.mxu0 %v151
    %v187 = vpop.f32.mrf.mxu0
    %v188 = vadd.f32 0.0, %v187
    %v189 = vpop.f32.mrf.mxu0
    %v190 = vadd.f32 0.0, %v189
    %191 = vmatmul.bf16.gmra.mxu0 %v154
    %v192 = vpop.f32.mrf.mxu0
    %v193 = vadd.f32 0.0, %v192
    %v194 = vpop.f32.mrf.mxu0
    %v195 = vadd.f32 0.0, %v194
    %196 = vmatmul.bf16.gmra.mxu0 %v157
    %v197 = vpop.f32.mrf.mxu0
    %v198 = vadd.f32 0.0, %v197
    %v199 = vpop.f32.mrf.mxu0
    %v200 = vadd.f32 0.0, %v199
    %201 = vmatmul.bf16.gmra.mxu0 %v160
    %v202 = vpop.f32.mrf.mxu0
    %v203 = vadd.f32 0.0, %v202
    %v204 = vpop.f32.mrf.mxu0
    %v205 = vadd.f32 0.0, %v204
    %206 = vmatmul.bf16.gmra.mxu0 %v163
    %v207 = vpop.f32.mrf.mxu0
    %v208 = vadd.f32 0.0, %v207
    %v209 = vpop.f32.mrf.mxu0
    %v210 = vadd.f32 0.0, %v209
    %211 = vmatmul.bf16.gmra.mxu0 %v166
    %v212 = vpop.f32.mrf.mxu0
    %v213 = vadd.f32 0.0, %v212
    %v214 = vpop.f32.mrf.mxu0
    %v215 = vadd.f32 0.0, %v214
    %216 = vdwg.mxu0
    %v217 = vld [vmem:[%s1] sm:$0xff]
    %v218 = vpack.c.bf16 %v217, %v217
    %v219 = vld [vmem:[%s4] sm:$0xf]
    %v220 = vld [vmem:[%s4 + $0x4] sm:$0xf]
    %v221 = vld [vmem:[%s5] sm:$0x1]
    %v223 = vperm.slane %v221, 0
    %v227 = vunpack.c.l.b16 %v219
    %v228 = vunpack.c.l.b16 %v220
    %v229 = vpack.c.b16 %v228, %v227
    %vm231 = vcmask 130048
    %v233 = vsel %vm231, %v218, 0
    %235 = vmatpush.bf16.msra.mxu0 0
    %236 = vmatpush.bf16.msra.mxu0 0
    %237 = vmatpush.bf16.msra.mxu0 0
    %238 = vmatpush.bf16.msra.mxu0 0
    %239 = vmatpush.bf16.msra.mxu0 0
    %240 = vmatpush.bf16.msra.mxu0 0
    %241 = vmatpush.bf16.msra.mxu0 0
    %242 = vmatpush.bf16.msra.mxu0 %v229
    %243 = vmatmul.bf16.gmra.mxu0 %v233
    %v244 = vpop.f32.mrf.mxu0
    %v245 = vadd.f32 %v223, %v244
    %v246 = vpop.f32.mrf.mxu0
    %247 = vdwg.mxu0
    %v249 = vrot.slane %v245, 1
    %v250 = vrot.slane %v245, 2
    %v251 = vrot.slane %v245, 3
    %v252 = vrot.slane %v245, 4
    %v253 = vrot.slane %v245, 5
    %v254 = vrot.slane %v245, 6
    %v255 = vrot.slane %v245, 7
    %v256 = vperm.slane %v245, 0
    %v257 = vperm.slane %v249, 0
    %v258 = vperm.slane %v250, 0
    %v259 = vperm.slane %v251, 0
    %v260 = vperm.slane %v252, 0
    %v261 = vperm.slane %v253, 0
    %v262 = vperm.slane %v254, 0
    %v263 = vperm.slane %v255, 0
    %v272 = vadd.f32 %v178, %v256
    %v273 = vadd.f32 %v180, %v256
    %v274 = vadd.f32 %v183, %v257
    %v275 = vadd.f32 %v185, %v257
    %v276 = vadd.f32 %v188, %v258
    %v277 = vadd.f32 %v190, %v258
    %v278 = vadd.f32 %v193, %v259
    %v279 = vadd.f32 %v195, %v259
    %v280 = vadd.f32 %v198, %v260
    %v281 = vadd.f32 %v200, %v260
    %v282 = vadd.f32 %v203, %v261
    %v283 = vadd.f32 %v205, %v261
    %v284 = vadd.f32 %v208, %v262
    %v285 = vadd.f32 %v210, %v262
    %v286 = vadd.f32 %v213, %v263
    %v287 = vadd.f32 %v215, %v263
    %v288 = vtanh.pop %v272
    %v289 = vtanh.pop %v273
    %v290 = vtanh.pop %v274
    %v291 = vtanh.pop %v275
    %v292 = vtanh.pop %v276
    %v293 = vtanh.pop %v277
    %v294 = vtanh.pop %v278
    %v295 = vtanh.pop %v279
    %v296 = vtanh.pop %v280
    %v297 = vtanh.pop %v281
    %v298 = vtanh.pop %v282
    %v299 = vtanh.pop %v283
    %v300 = vtanh.pop %v284
    %v301 = vtanh.pop %v285
    %v302 = vtanh.pop %v286
    %v303 = vtanh.pop %v287
    %v304 = vld [vmem:[%s6] sm:$0x1]
    %v306 = vperm.slane %v304, 0
    %v308 = vmul.f32 %v288, %v306
    %v309 = vmul.f32 %v289, %v306
    %v310 = vmul.f32 %v290, %v306
    %v311 = vmul.f32 %v291, %v306
    %v312 = vmul.f32 %v292, %v306
    %v313 = vmul.f32 %v293, %v306
    %v314 = vmul.f32 %v294, %v306
    %v315 = vmul.f32 %v295, %v306
    %v316 = vmul.f32 %v296, %v306
    %v317 = vmul.f32 %v297, %v306
    %v318 = vmul.f32 %v298, %v306
    %v319 = vmul.f32 %v299, %v306
    %v320 = vmul.f32 %v300, %v306
    %v321 = vmul.f32 %v301, %v306
    %v322 = vmul.f32 %v302, %v306
    %v323 = vmul.f32 %v303, %v306
    %v324 = vsel %vm231, %v308, 0.0
    %325 = vadd.xlane.f32.xlu0 %v324
    %v326 = vpop.xlane.xlu0 %325
    %v327 = vsel %vm231, %v309, 0.0
    %328 = vadd.xlane.f32.xlu0 %v327
    %v329 = vpop.xlane.xlu0 %328
    %v330 = vsel %vm231, %v310, 0.0
    %331 = vadd.xlane.f32.xlu0 %v330
    %v332 = vpop.xlane.xlu0 %331
    %v333 = vsel %vm231, %v311, 0.0
    %334 = vadd.xlane.f32.xlu0 %v333
    %v335 = vpop.xlane.xlu0 %334
    %v336 = vsel %vm231, %v312, 0.0
    %337 = vadd.xlane.f32.xlu0 %v336
    %v338 = vpop.xlane.xlu0 %337
    %v339 = vsel %vm231, %v313, 0.0
    %340 = vadd.xlane.f32.xlu0 %v339
    %v341 = vpop.xlane.xlu0 %340
    %v342 = vsel %vm231, %v314, 0.0
    %343 = vadd.xlane.f32.xlu0 %v342
    %v344 = vpop.xlane.xlu0 %343
    %v345 = vsel %vm231, %v315, 0.0
    %346 = vadd.xlane.f32.xlu0 %v345
    %v347 = vpop.xlane.xlu0 %346
    %v348 = vsel %vm231, %v316, 0.0
    %349 = vadd.xlane.f32.xlu0 %v348
    %v350 = vpop.xlane.xlu0 %349
    %v351 = vsel %vm231, %v317, 0.0
    %352 = vadd.xlane.f32.xlu0 %v351
    %v353 = vpop.xlane.xlu0 %352
    %v354 = vsel %vm231, %v318, 0.0
    %355 = vadd.xlane.f32.xlu0 %v354
    %v356 = vpop.xlane.xlu0 %355
    %v357 = vsel %vm231, %v319, 0.0
    %358 = vadd.xlane.f32.xlu0 %v357
    %v359 = vpop.xlane.xlu0 %358
    %v360 = vsel %vm231, %v320, 0.0
    %361 = vadd.xlane.f32.xlu0 %v360
    %v362 = vpop.xlane.xlu0 %361
    %v363 = vsel %vm231, %v321, 0.0
    %364 = vadd.xlane.f32.xlu0 %v363
    %v365 = vpop.xlane.xlu0 %364
    %v366 = vsel %vm231, %v322, 0.0
    %367 = vadd.xlane.f32.xlu0 %v366
    %v368 = vpop.xlane.xlu0 %367
    %v369 = vsel %vm231, %v323, 0.0
    %370 = vadd.xlane.f32.xlu0 %v369
    %v371 = vpop.xlane.xlu0 %370
    %v388 = vlaneseq
    %v389 = vand.u32 %v388, 127
    %v390 = vperm.slane %v326, %v389
    %v391 = vadd.s32 %v389, 4294967288
    %v392 = vperm.slane %v329, %v391
    %vm393 = vcmask 130112
    %v394 = vsel %vm393, %v392, %v390
    %v395 = vperm.slane %v332, %v389
    %v396 = vperm.slane %v335, %v391
    %v397 = vsel %vm393, %v396, %v395
    %v398 = vperm.slane %v338, %v389
    %v399 = vperm.slane %v341, %v391
    %v400 = vsel %vm393, %v399, %v398
    %v401 = vperm.slane %v344, %v389
    %v402 = vperm.slane %v347, %v391
    %v403 = vsel %vm393, %v402, %v401
    %v404 = vperm.slane %v350, %v389
    %v405 = vperm.slane %v353, %v391
    %v406 = vsel %vm393, %v405, %v404
    %v407 = vperm.slane %v356, %v389
    %v408 = vperm.slane %v359, %v391
    %v409 = vsel %vm393, %v408, %v407
    %v410 = vperm.slane %v362, %v389
    %v411 = vperm.slane %v365, %v391
    %v412 = vsel %vm393, %v411, %v410
    %v413 = vperm.slane %v368, %v389
    %v414 = vperm.slane %v371, %v391
    %v415 = vsel %vm393, %v414, %v413
    %vm416 = vcmask 1041409
    %v417 = vsel %vm416, %v397, %v394
    %vm418 = vcmask 1042434
    %v419 = vsel %vm418, %v400, %v417
    %vm420 = vcmask 1043459
    %v421 = vsel %vm420, %v403, %v419
    %vm422 = vcmask 1044484
    %v423 = vsel %vm422, %v406, %v421
    %vm424 = vcmask 1045509
    %v425 = vsel %vm424, %v409, %v423
    %vm426 = vcmask 1046534
    %v427 = vsel %vm426, %v412, %v425
    %vm428 = vcmask 1047559
    %v429 = vsel %vm428, %v415, %v427
    %v431 = vsel %vm231, %v429, -inf
    %432 = vmax.xlane.f32.xlu0 %v431
    %v433 = vpop.xlane.xlu0 %432
    %v435 = vperm.slane %v433, 0
    %v436 = vperm.slane %v433, 1
    %v437 = vperm.slane %v433, 2
    %v438 = vperm.slane %v433, 3
    %v439 = vperm.slane %v433, 4
    %v440 = vperm.slane %v433, 5
    %v441 = vperm.slane %v433, 6
    %v442 = vperm.slane %v433, 7
    %v451 = vsub.f32 %v326, %v435
    %v452 = vsub.f32 %v329, %v435
    %v453 = vsub.f32 %v332, %v436
    %v454 = vsub.f32 %v335, %v436
    %v455 = vsub.f32 %v338, %v437
    %v456 = vsub.f32 %v341, %v437
    %v457 = vsub.f32 %v344, %v438
    %v458 = vsub.f32 %v347, %v438
    %v459 = vsub.f32 %v350, %v439
    %v460 = vsub.f32 %v353, %v439
    %v461 = vsub.f32 %v356, %v440
    %v462 = vsub.f32 %v359, %v440
    %v463 = vsub.f32 %v362, %v441
    %v464 = vsub.f32 %v365, %v441
    %v465 = vsub.f32 %v368, %v442
    %v466 = vsub.f32 %v371, %v442
    %v467 = vmul.f32 %v451, 1.442695
    %v468 = vpow.pop %v467
    %v469 = vmul.f32 %v452, 1.442695
    %v470 = vpow.pop %v469
    %v471 = vmul.f32 %v453, 1.442695
    %v472 = vpow.pop %v471
    %v473 = vmul.f32 %v454, 1.442695
    %v474 = vpow.pop %v473
    %v475 = vmul.f32 %v455, 1.442695
    %v476 = vpow.pop %v475
    %v477 = vmul.f32 %v456, 1.442695
    %v478 = vpow.pop %v477
    %v479 = vmul.f32 %v457, 1.442695
    %v480 = vpow.pop %v479
    %v481 = vmul.f32 %v458, 1.442695
    %v482 = vpow.pop %v481
    %v483 = vmul.f32 %v459, 1.442695
    %v484 = vpow.pop %v483
    %v485 = vmul.f32 %v460, 1.442695
    %v486 = vpow.pop %v485
    %v487 = vmul.f32 %v461, 1.442695
    %v488 = vpow.pop %v487
    %v489 = vmul.f32 %v462, 1.442695
    %v490 = vpow.pop %v489
    %v491 = vmul.f32 %v463, 1.442695
    %v492 = vpow.pop %v491
    %v493 = vmul.f32 %v464, 1.442695
    %v494 = vpow.pop %v493
    %v495 = vmul.f32 %v465, 1.442695
    %v496 = vpow.pop %v495
    %v497 = vmul.f32 %v466, 1.442695
    %v498 = vpow.pop %v497
    %515 = vset.pattern.permute.xlu0 0
    %516 = vperm.xlu0 %515, %v468
    %v517 = vpop.permute.xlu0 %516
    %518 = vset.pattern.permute.xlu0 0
    %519 = vperm.xlu0 %518, %v470
    %v520 = vpop.permute.xlu0 %519
    %521 = vset.pattern.permute.xlu0 0
    %522 = vperm.xlu0 %521, %v472
    %v523 = vpop.permute.xlu0 %522
    %524 = vset.pattern.permute.xlu0 0
    %525 = vperm.xlu0 %524, %v474
    %v526 = vpop.permute.xlu0 %525
    %527 = vset.pattern.permute.xlu0 0
    %528 = vperm.xlu0 %527, %v476
    %v529 = vpop.permute.xlu0 %528
    %530 = vset.pattern.permute.xlu0 0
    %531 = vperm.xlu0 %530, %v478
    %v532 = vpop.permute.xlu0 %531
    %533 = vset.pattern.permute.xlu0 0
    %534 = vperm.xlu0 %533, %v480
    %v535 = vpop.permute.xlu0 %534
    %536 = vset.pattern.permute.xlu0 0
    %537 = vperm.xlu0 %536, %v482
    %v538 = vpop.permute.xlu0 %537
    %539 = vset.pattern.permute.xlu0 0
    %540 = vperm.xlu0 %539, %v484
    %v541 = vpop.permute.xlu0 %540
    %542 = vset.pattern.permute.xlu0 0
    %543 = vperm.xlu0 %542, %v486
    %v544 = vpop.permute.xlu0 %543
    %545 = vset.pattern.permute.xlu0 0
    %546 = vperm.xlu0 %545, %v488
    %v547 = vpop.permute.xlu0 %546
    %548 = vset.pattern.permute.xlu0 0
    %549 = vperm.xlu0 %548, %v490
    %v550 = vpop.permute.xlu0 %549
    %551 = vset.pattern.permute.xlu0 0
    %552 = vperm.xlu0 %551, %v492
    %v553 = vpop.permute.xlu0 %552
    %554 = vset.pattern.permute.xlu0 0
    %555 = vperm.xlu0 %554, %v494
    %v556 = vpop.permute.xlu0 %555
    %557 = vset.pattern.permute.xlu0 0
    %558 = vperm.xlu0 %557, %v496
    %v559 = vpop.permute.xlu0 %558
    %560 = vset.pattern.permute.xlu0 0
    %561 = vperm.xlu0 %560, %v498
    %v562 = vpop.permute.xlu0 %561
    %v563 = vperm.slane %v517, %v389
    %v564 = vperm.slane %v520, %v391
    %v565 = vsel %vm393, %v564, %v563
    %v566 = vperm.slane %v523, %v389
    %v567 = vperm.slane %v526, %v391
    %v568 = vsel %vm393, %v567, %v566
    %v569 = vperm.slane %v529, %v389
    %v570 = vperm.slane %v532, %v391
    %v571 = vsel %vm393, %v570, %v569
    %v572 = vperm.slane %v535, %v389
    %v573 = vperm.slane %v538, %v391
    %v574 = vsel %vm393, %v573, %v572
    %v575 = vperm.slane %v541, %v389
    %v576 = vperm.slane %v544, %v391
    %v577 = vsel %vm393, %v576, %v575
    %v578 = vperm.slane %v547, %v389
    %v579 = vperm.slane %v550, %v391
    %v580 = vsel %vm393, %v579, %v578
    %v581 = vperm.slane %v553, %v389
    %v582 = vperm.slane %v556, %v391
    %v583 = vsel %vm393, %v582, %v581
    %v584 = vperm.slane %v559, %v389
    %v585 = vperm.slane %v562, %v391
    %v586 = vsel %vm393, %v585, %v584
    %v587 = vsel %vm416, %v568, %v565
    %v588 = vsel %vm418, %v571, %v587
    %v589 = vsel %vm420, %v574, %v588
    %v590 = vsel %vm422, %v577, %v589
    %v591 = vsel %vm424, %v580, %v590
    %v592 = vsel %vm426, %v583, %v591
    %v593 = vsel %vm428, %v586, %v592
    %v595 = vsel %vm231, %v593, 0.0
    %596 = vadd.xlane.f32.xlu0 %v595
    %v597 = vpop.xlane.xlu0 %596
    %v598 = vrcp.pop %v597
    %v600 = vperm.slane %v598, 0
    %v601 = vperm.slane %v598, 1
    %v602 = vperm.slane %v598, 2
    %v603 = vperm.slane %v598, 3
    %v604 = vperm.slane %v598, 4
    %v605 = vperm.slane %v598, 5
    %v606 = vperm.slane %v598, 6
    %v607 = vperm.slane %v598, 7
    %v616 = vmul.f32 %v468, %v600
    %v617 = vmul.f32 %v470, %v600
    %v618 = vmul.f32 %v472, %v601
    %v619 = vmul.f32 %v474, %v601
    %v620 = vmul.f32 %v476, %v602
    %v621 = vmul.f32 %v478, %v602
    %v622 = vmul.f32 %v480, %v603
    %v623 = vmul.f32 %v482, %v603
    %v624 = vmul.f32 %v484, %v604
    %v625 = vmul.f32 %v486, %v604
    %v626 = vmul.f32 %v488, %v605
    %v627 = vmul.f32 %v490, %v605
    %v628 = vmul.f32 %v492, %v606
    %v629 = vmul.f32 %v494, %v606
    %v630 = vmul.f32 %v496, %v607
    %v631 = vmul.f32 %v498, %v607
    %v632 = vunpack.c.l.bf16 %v71
    %v633 = vunpack.c.l.bf16 %v72
    %v634 = vunpack.c.l.bf16 %v73
    %v635 = vunpack.c.l.bf16 %v74
    %v636 = vunpack.c.l.bf16 %v75
    %v637 = vunpack.c.l.bf16 %v76
    %v638 = vunpack.c.l.bf16 %v77
    %v639 = vunpack.c.l.bf16 %v78
    %v640 = vunpack.c.l.bf16 %v79
    %v641 = vunpack.c.l.bf16 %v80
    %v642 = vunpack.c.l.bf16 %v81
    %v643 = vunpack.c.l.bf16 %v82
    %v644 = vunpack.c.l.bf16 %v83
    %v645 = vunpack.c.l.bf16 %v84
    %v646 = vunpack.c.l.bf16 %v85
    %v647 = vunpack.c.l.bf16 %v86
    %649 = vset.pattern.permute.xlu0 0
    %650 = vperm.xlu0 %649, %v616
    %v651 = vpop.permute.xlu0 %650
    %654 = vset.pattern.permute.xlu0 0
    %655 = vperm.xlu0 %654, %v617
    %v656 = vpop.permute.xlu0 %655
    %659 = vset.pattern.permute.xlu0 0
    %660 = vperm.xlu0 %659, %v618
    %v661 = vpop.permute.xlu0 %660
    %664 = vset.pattern.permute.xlu0 0
    %665 = vperm.xlu0 %664, %v619
    %v666 = vpop.permute.xlu0 %665
    %669 = vset.pattern.permute.xlu0 0
    %670 = vperm.xlu0 %669, %v620
    %v671 = vpop.permute.xlu0 %670
    %674 = vset.pattern.permute.xlu0 0
    %675 = vperm.xlu0 %674, %v621
    %v676 = vpop.permute.xlu0 %675
    %679 = vset.pattern.permute.xlu0 0
    %680 = vperm.xlu0 %679, %v622
    %v681 = vpop.permute.xlu0 %680
    %684 = vset.pattern.permute.xlu0 0
    %685 = vperm.xlu0 %684, %v623
    %v686 = vpop.permute.xlu0 %685
    %689 = vset.pattern.permute.xlu0 0
    %690 = vperm.xlu0 %689, %v624
    %v691 = vpop.permute.xlu0 %690
    %694 = vset.pattern.permute.xlu0 0
    %695 = vperm.xlu0 %694, %v625
    %v696 = vpop.permute.xlu0 %695
    %699 = vset.pattern.permute.xlu0 0
    %700 = vperm.xlu0 %699, %v626
    %v701 = vpop.permute.xlu0 %700
    %704 = vset.pattern.permute.xlu0 0
    %705 = vperm.xlu0 %704, %v627
    %v706 = vpop.permute.xlu0 %705
    %709 = vset.pattern.permute.xlu0 0
    %710 = vperm.xlu0 %709, %v628
    %v711 = vpop.permute.xlu0 %710
    %714 = vset.pattern.permute.xlu0 0
    %715 = vperm.xlu0 %714, %v629
    %v716 = vpop.permute.xlu0 %715
    %719 = vset.pattern.permute.xlu0 0
    %720 = vperm.xlu0 %719, %v630
    %v721 = vpop.permute.xlu0 %720
    %724 = vset.pattern.permute.xlu0 0
    %725 = vperm.xlu0 %724, %v631
    %v726 = vpop.permute.xlu0 %725
    %v728 = vmul.f32 %v651, %v632
    %v729 = vmul.f32 %v656, %v633
    %v730 = vmul.f32 %v661, %v634
    %v731 = vmul.f32 %v666, %v635
    %v732 = vmul.f32 %v671, %v636
    %v733 = vmul.f32 %v676, %v637
    %v734 = vmul.f32 %v681, %v638
    %v735 = vmul.f32 %v686, %v639
    %v736 = vmul.f32 %v691, %v640
    %v737 = vmul.f32 %v696, %v641
    %v738 = vmul.f32 %v701, %v642
    %v739 = vmul.f32 %v706, %v643
    %v740 = vmul.f32 %v711, %v644
    %v741 = vmul.f32 %v716, %v645
    %v742 = vmul.f32 %v721, %v646
    %v743 = vmul.f32 %v726, %v647
    %v744 = vsel %vm143, %v728, 0.0
    %v745 = vsel %vm143, %v729, 0.0
    %v746 = vadd.f32 %v744, %v745
    %v747 = vrot.slane %v746, 4
    %v748 = vadd.f32 %v746, %v747
    %v749 = vrot.slane %v748, 2
    %v750 = vadd.f32 %v748, %v749
    %v751 = vrot.slane %v750, 1
    %v752 = vadd.f32 %v750, %v751
    %v753 = vsel %vm143, %v730, 0.0
    %v754 = vsel %vm143, %v731, 0.0
    %v755 = vadd.f32 %v753, %v754
    %v756 = vrot.slane %v755, 4
    %v757 = vadd.f32 %v755, %v756
    %v758 = vrot.slane %v757, 2
    %v759 = vadd.f32 %v757, %v758
    %v760 = vrot.slane %v759, 1
    %v761 = vadd.f32 %v759, %v760
    %v762 = vsel %vm143, %v732, 0.0
    %v763 = vsel %vm143, %v733, 0.0
    %v764 = vadd.f32 %v762, %v763
    %v765 = vrot.slane %v764, 4
    %v766 = vadd.f32 %v764, %v765
    %v767 = vrot.slane %v766, 2
    %v768 = vadd.f32 %v766, %v767
    %v769 = vrot.slane %v768, 1
    %v770 = vadd.f32 %v768, %v769
    %v771 = vsel %vm143, %v734, 0.0
    %v772 = vsel %vm143, %v735, 0.0
    %v773 = vadd.f32 %v771, %v772
    %v774 = vrot.slane %v773, 4
    %v775 = vadd.f32 %v773, %v774
    %v776 = vrot.slane %v775, 2
    %v777 = vadd.f32 %v775, %v776
    %v778 = vrot.slane %v777, 1
    %v779 = vadd.f32 %v777, %v778
    %v780 = vsel %vm143, %v736, 0.0
    %v781 = vsel %vm143, %v737, 0.0
    %v782 = vadd.f32 %v780, %v781
    %v783 = vrot.slane %v782, 4
    %v784 = vadd.f32 %v782, %v783
    %v785 = vrot.slane %v784, 2
    %v786 = vadd.f32 %v784, %v785
    %v787 = vrot.slane %v786, 1
    %v788 = vadd.f32 %v786, %v787
    %v789 = vsel %vm143, %v738, 0.0
    %v790 = vsel %vm143, %v739, 0.0
    %v791 = vadd.f32 %v789, %v790
    %v792 = vrot.slane %v791, 4
    %v793 = vadd.f32 %v791, %v792
    %v794 = vrot.slane %v793, 2
    %v795 = vadd.f32 %v793, %v794
    %v796 = vrot.slane %v795, 1
    %v797 = vadd.f32 %v795, %v796
    %v798 = vsel %vm143, %v740, 0.0
    %v799 = vsel %vm143, %v741, 0.0
    %v800 = vadd.f32 %v798, %v799
    %v801 = vrot.slane %v800, 4
    %v802 = vadd.f32 %v800, %v801
    %v803 = vrot.slane %v802, 2
    %v804 = vadd.f32 %v802, %v803
    %v805 = vrot.slane %v804, 1
    %v806 = vadd.f32 %v804, %v805
    %v807 = vsel %vm143, %v742, 0.0
    %v808 = vsel %vm143, %v743, 0.0
    %v809 = vadd.f32 %v807, %v808
    %v810 = vrot.slane %v809, 4
    %v811 = vadd.f32 %v809, %v810
    %v812 = vrot.slane %v811, 2
    %v813 = vadd.f32 %v811, %v812
    %v814 = vrot.slane %v813, 1
    %v815 = vadd.f32 %v813, %v814
    %816 = vst [vmem:[#allocation7] sm:$0xf] 0
    %v817 = vpack.c.bf16 %v70, %v70
    %vm818 = vcmask 125952
    %819 = vst.msk [vmem:[#allocation7] sm:$0xf] %vm818, %v817
    %v820 = vpack.c.bf16 %v752, %v752
    %v821 = vpack.c.bf16 %v761, %v761
    %v822 = vpack.c.bf16 %v770, %v770
    %v823 = vpack.c.bf16 %v779, %v779
    %v824 = vpack.c.bf16 %v788, %v788
    %v825 = vpack.c.bf16 %v797, %v797
    %v826 = vpack.c.bf16 %v806, %v806
    %v827 = vpack.c.bf16 %v815, %v815
    %v836 = vunpack.c.l.b16 %v820
    %v837 = vunpack.c.l.b16 %v821
    %v838 = vunpack.c.l.b16 %v822
    %v839 = vunpack.c.l.b16 %v823
    %v840 = vunpack.c.l.b16 %v824
    %v841 = vunpack.c.l.b16 %v825
    %v842 = vunpack.c.l.b16 %v826
    %v843 = vunpack.c.l.b16 %v827
    %v844 = vsel %vm416, %v837, %v836
    %v845 = vsel %vm418, %v838, %v844
    %v846 = vsel %vm420, %v839, %v845
    %v847 = vsel %vm422, %v840, %v846
    %v848 = vsel %vm424, %v841, %v847
    %v849 = vsel %vm426, %v842, %v848
    %v850 = vsel %vm428, %v843, %v849
    %v851 = vpack.c.b16 %v850, %v850
    %852 = vrot.lane.b32.xlu0 %v851, 16
    %v853 = vpop.permute.xlu0 %852
    %vm855 = vcmask 388224
    %856 = vst.msk [vmem:[#allocation7] sm:$0xf] %vm855, %v853
    %v857 = vld [vmem:[#allocation7] sm:$0xf]
    %v858 = vld [vmem:[#allocation5] sm:$0xf]
    %v859 = vld [vmem:[#allocation5 + $0x4] sm:$0xf]
    %v860 = vld [vmem:[#allocation5 + $0x8] sm:$0xf]
    %v861 = vld [vmem:[#allocation5 + $0xc] sm:$0xf]
    %v862 = vld [vmem:[#allocation5 + $0x10] sm:$0xf]
    %v863 = vld [vmem:[#allocation5 + $0x14] sm:$0xf]
    %v864 = vld [vmem:[#allocation5 + $0x18] sm:$0xf]
    %v865 = vld [vmem:[#allocation5 + $0x1c] sm:$0xf]
    %v866 = vld [vmem:[#allocation5 + $0x20] sm:$0xf]
    %v867 = vld [vmem:[#allocation5 + $0x24] sm:$0xf]
    %v868 = vld [vmem:[#allocation5 + $0x28] sm:$0xf]
    %v869 = vld [vmem:[#allocation5 + $0x2c] sm:$0xf]
    %v870 = vld [vmem:[#allocation5 + $0x30] sm:$0xf]
    %v871 = vld [vmem:[#allocation5 + $0x34] sm:$0xf]
    %v872 = vld [vmem:[#allocation5 + $0x38] sm:$0xf]
    %v873 = vld [vmem:[#allocation5 + $0x3c] sm:$0xf]
    %v874 = vld [vmem:[%s8] sm:$0x1]
    %v876 = vperm.slane %v874, 0
    %v894 = vunpack.c.l.b16 %v858
    %v895 = vunpack.c.l.b16 %v859
    %v896 = vunpack.c.l.b16 %v860
    %v897 = vunpack.c.l.b16 %v861
    %v898 = vunpack.c.l.b16 %v862
    %v899 = vunpack.c.l.b16 %v863
    %v900 = vunpack.c.l.b16 %v864
    %v901 = vunpack.c.l.b16 %v865
    %v902 = vunpack.c.l.b16 %v866
    %v903 = vunpack.c.l.b16 %v867
    %v904 = vunpack.c.l.b16 %v868
    %v905 = vunpack.c.l.b16 %v869
    %v906 = vunpack.c.l.b16 %v870
    %v907 = vunpack.c.l.b16 %v871
    %v908 = vunpack.c.l.b16 %v872
    %v909 = vunpack.c.l.b16 %v873
    %v910 = vpack.c.b16 %v895, %v894
    %v911 = vpack.c.b16 %v897, %v896
    %v912 = vpack.c.b16 %v899, %v898
    %v913 = vpack.c.b16 %v901, %v900
    %v914 = vpack.c.b16 %v903, %v902
    %v915 = vpack.c.b16 %v905, %v904
    %v916 = vpack.c.b16 %v907, %v906
    %v917 = vpack.c.b16 %v909, %v908
    %926 = vmatpush.bf16.msra.mxu0 %v917
    %927 = vmatpush.bf16.msra.mxu0 %v916
    %928 = vmatpush.bf16.msra.mxu0 %v915
    %929 = vmatpush.bf16.msra.mxu0 %v914
    %930 = vmatpush.bf16.msra.mxu0 %v913
    %931 = vmatpush.bf16.msra.mxu0 %v912
    %932 = vmatpush.bf16.msra.mxu0 %v911
    %933 = vmatpush.bf16.msra.mxu0 %v910
    %934 = vmatmul.bf16.gmra.mxu0 %v857
    %v935 = vpop.f32.mrf.mxu0
    %v936 = vadd.f32 %v876, %v935
    %v937 = vpop.f32.mrf.mxu0
    %938 = vdwg.mxu0
    %v939 = vxor.u32 %v936, 2147483648
    %v940 = vmul.f32 %v939, 1.442695
    %v941 = vpow.pop %v940
    %v942 = vadd.f32 %v941, 1.0
    %v943 = vrcp.pop %v942
    %v944 = vmul.f32 %v942, %v943
    %v945 = vsub.f32 1.0, %v944
    %v946 = vmul.f32 %v943, %v945
    %v947 = vadd.f32 %v943, %v946
    %vm948 = vweird.f32 %v942
    %vm949 = vweird.f32 %v943
    %vm950 = vmor %vm948, %vm949
    %v951 = vsel %vm950, %v943, %v947
    %v952 = vand.u32 2147483647, %v942
    %vm953 = vcmp.eq.f32.partialorder %v952, 8.507059e+37
    %v954 = vand.u32 %v942, 2147483648
    %v955 = vor.u32 1.1754944e-38, %v954
    %v956 = vsel %vm953, %v955, %v951
    %v957 = vmul.f32 1.0, %v956
    %v958 = vtanh.pop %v936
    %960 = vrot.lane.b32.xlu0 %v958, 96
    %v961 = vpop.permute.xlu0 %960
    %v963 = vmul.f32 %v957, %v961
    %v964 = vtanh.pop %v963
    %966 = vrot.lane.b32.xlu0 %v964, 48
    %v967 = vpop.permute.xlu0 %966
    %v969 = vmul.f32 %v957, %v967
    %971 = vrot.lane.b32.xlu0 %v969, 80
    %v972 = vpop.permute.xlu0 %971
    %974 = vst.msk [vmem:[#allocation8] sm:$0xff] %vm231, %v972
    %975 = vrot.lane.b32.xlu0 %v969, 16
    %v976 = vpop.permute.xlu0 %975
    %978 = vst.msk [vmem:[#allocation10] sm:$0xff] %vm231, %v976
    %v979 = vpack.c.bf16 %v969, %v969
    %vm980 = vcmask 519552
    %981 = vst.msk [vmem:[#allocation7] sm:$0xf] %vm980, %v979
    %983 = vrot.lane.b32.xlu0 %v979, 80
    %v984 = vpop.permute.xlu0 %983
    %vm986 = vcmask 650752
    %987 = vst.msk [vmem:[#allocation7] sm:$0xf] %vm986, %v984
    // Predicated region
    $region46: #{tpu_custom_call.1} parent=1 // pred_check
      _
    $region47: #{tpu_custom_call.1} parent=1 // pred_check_branch
      %989 = sbr.rel (0) target = $region49
    $region48: #{tpu_custom_call.1} parent=1 // pred_region
      %991 = vsyncadd [#allocation4], 0
      %s993 = sshll.u32 [#allocation7], 4
      %s994 = int_to_ptr.vmem [resolvable:$true] %s993
      %s995 = sshll.u32 %s9, 4
      %s996 = int_to_ptr.hbm [resolvable:$true] %s995
      %998 = dma.vmem_to_hbm [thread:$0]  %s994, 64, %s996, [#allocation4]
    $region49: #{tpu_custom_call.1} parent=1 // pred_fallthru
      _
    // Predicated region
    $region50: #{tpu_custom_call.1} parent=1 // pred_check
      _
    $region51: #{tpu_custom_call.1} parent=1 // pred_check_branch
      %1000 = sbr.rel (0) target = $region53
    $region52: #{tpu_custom_call.1} parent=1 // pred_region
      %1002 = vsyncadd [#allocation9], 0
      %s1004 = sshll.u32 [#allocation8], 4
      %s1005 = int_to_ptr.vmem [resolvable:$true] %s1004
      %s1006 = sshll.u32 %s10, 4
      %s1007 = int_to_ptr.hbm [resolvable:$true] %s1006
      %1009 = dma.vmem_to_hbm [thread:$0]  %s1005, 128, %s1007, [#allocation9]
    $region53: #{tpu_custom_call.1} parent=1 // pred_fallthru
      _
    // Predicated region
    $region54: #{tpu_custom_call.1} parent=1 // pred_check
      _
    $region55: #{tpu_custom_call.1} parent=1 // pred_check_branch
      %1011 = sbr.rel (0) target = $region57
    $region56: #{tpu_custom_call.1} parent=1 // pred_region
      %1013 = vsyncadd [#allocation9], 0
      %s1015 = sshll.u32 [#allocation10], 4
      %s1016 = int_to_ptr.vmem [resolvable:$true] %s1015
      %s1017 = sshll.u32 %s11, 4
      %s1018 = int_to_ptr.hbm [resolvable:$true] %s1017
      %1020 = dma.vmem_to_hbm [thread:$0]  %s1016, 128, %s1018, [#allocation9]
    $region57: #{tpu_custom_call.1} parent=1 // pred_fallthru
      _
    // Predicated region
    $region58: #{tpu_custom_call.1} parent=1 // pred_check
      _
    $region59: #{tpu_custom_call.1} parent=1 // pred_check_branch
      %1022 = sbr.rel (0) target = $region61
    $region60: #{tpu_custom_call.1} parent=1 // pred_region
      %1024 = dma.done [#allocation4], 64
    $region61: #{tpu_custom_call.1} parent=1 // pred_fallthru
      _
    // Predicated region
    $region62: #{tpu_custom_call.1} parent=1 // pred_check
      _
    $region63: #{tpu_custom_call.1} parent=1 // pred_check_branch
      %1026 = sbr.rel (0) target = $region65
    $region64: #{tpu_custom_call.1} parent=1 // pred_region
      %1028 = dma.done [#allocation9], 128
    $region65: #{tpu_custom_call.1} parent=1 // pred_fallthru
      _
    // Predicated region
    $region66: #{tpu_custom_call.1} parent=1 // pred_check
      _
    $region67: #{tpu_custom_call.1} parent=1 // pred_check_branch
      %1030 = sbr.rel (0) target = $region69
    $region68: #{tpu_custom_call.1} parent=1 // pred_region
      %1032 = dma.done [#allocation9], 128
    $region69: #{tpu_custom_call.1} parent=1 // pred_fallthru
      _
    %1033 = vsyncpa [#allocation3], 1
    %1034 = vsyncpa [#allocation6], 1
    %1035 = vsyncpa [#allocation4], 1
    %1036 = vsyncpa [#allocation9], 1

</llo_original>
